<compile_context>
chip_gen: v7x
topology: tpu7x:2x2x1
jax: 0.10.0
libtpu: 0.0.40
codegen_flags: <defaults>
</compile_context>

<pallas_src>
import functools

import jax
import jax.numpy as jnp
from jax.experimental import pallas as pl
from jax.experimental.pallas import tpu as pltpu

_LANE = 128      # lane width: last dims padded to multiples of this
_SUBLANE = 16    # bf16 sublane packing: batch-tile rows padded to multiples


def _cdiv(a, b):
    return -(-a // b)


def _round_up(x, m):
    return _cdiv(x, m) * m


def _pad_to(a, shape):
    return jnp.pad(a, [(0, s - d) for d, s in zip(a.shape, shape)])


def _vmem_bytes(tile_b, Kp, Hp, Np, num_layers, stream_hidden):
    """Rough VMEM footprint.

    Weights/biases are single-buffered (pl.Buffered(1)); the x / out batch
    tiles are double-buffered by the pipeline; add the activation working set
    (h in f32 plus the bf16 ReLU copy) with some slack.
    """
    w = (Kp * Hp + Hp * Np) * 2 + (Hp + Np) * 4
    if num_layers:
        w += num_layers * Hp * 4                                   # hidden biases
        if stream_hidden:
            w += 2 * Hp * Hp * 2                                   # 2 layer slabs (scratch)
        else:
            w += num_layers * Hp * Hp * 2                          # resident bf16 stack
    io = 2 * tile_b * Kp * 2 + 2 * tile_b * Np * 4                 # x / out (double-buffered)
    act = 3 * tile_b * Hp * 4                                      # h working set + slack
    return w + io + act


# -----------------------------------------------------------------------------
# Fused MLP kernel: runs the full layer stack for one batch tile.
# -----------------------------------------------------------------------------
def _mlp_kernel(*refs, num_layers, stream_hidden):
    refs = list(refs)
    x_ref, w_in_ref, b_in_ref = refs[0], refs[1], refs[2]
    pos = 3
    if num_layers > 0:
        w_hid_ref, b_hid_ref = refs[pos], refs[pos + 1]
        pos += 2
    w_out_ref, b_out_ref, o_ref = refs[pos], refs[pos + 1], refs[pos + 2]
    pos += 3
    if num_layers > 0 and stream_hidden:
        wbuf, sem = refs[pos], refs[pos + 1]
        # Prefetch hidden layer 0's weight slab; the DMA hides under the
        # input-layer matmul below.
        pltpu.make_async_copy(w_hid_ref.at[0], wbuf.at[0], sem.at[0]).start()

    # Input linear (no activation before it).
    h = jnp.dot(x_ref[...], w_in_ref[...],
                preferred_element_type=jnp.float32) + b_in_ref[...]

    # Hidden blocks: Dropout (identity in eval) -> ReLU -> Linear.
    # num_layers is small and static -> unrolled; h stays on-chip in f32.
    for l in range(num_layers):
        a = jnp.maximum(h, 0.0).astype(jnp.bfloat16)
        if stream_hidden:
            slot = l % 2
            pltpu.make_async_copy(w_hid_ref.at[l], wbuf.at[slot],
                                  sem.at[slot]).wait()
            if l + 1 < num_layers:
                nslot = (l + 1) % 2
                pltpu.make_async_copy(w_hid_ref.at[l + 1], wbuf.at[nslot],
                                      sem.at[nslot]).start()
            w_l = wbuf[slot]
        else:
            w_l = w_hid_ref[l]
        h = jnp.dot(a, w_l, preferred_element_type=jnp.float32) + b_hid_ref[l]

    # Output linear (no ReLU before it, matching the PyTorch module).
    y = jnp.dot(h.astype(jnp.bfloat16), w_out_ref[...],
                preferred_element_type=jnp.float32) + b_out_ref[...]
    o_ref[...] = y.astype(o_ref.dtype)


# -----------------------------------------------------------------------------
# Wrapper: pad to (8,128)-friendly shapes, cast MXU inputs to bf16, call once.
# -----------------------------------------------------------------------------
def mlp_forward(params, x, mask=None, *, force_stream=False,
                out_dtype=jnp.float32):
    """Eval-mode forward (return_all=False). `mask` is unused in this path,
    matching the PyTorch module. Set out_dtype=jnp.bfloat16 if downstream
    consumers accept it (halves output writeback)."""
    del mask
    w_in, b_in = params["input"]            # [Kin, H0], [1, H0]
    w_out, b_out = params["output"]         # [H0, Nout], [1, Nout]
    hidden = params["hidden"]
    num_layers = len(hidden)

    B, Kin = x.shape
    H0 = w_in.shape[1]
    Nout = w_out.shape[1]

    # Lane-dense padded feature sizes (multiples of 128).
    Kp = _round_up(Kin, _LANE)
    Hp = _round_up(H0, _LANE)
    Np = _round_up(Nout, _LANE)

    # ---- per-generation VMEM budget ----------------------------------------
    try:
        vmem_cap = int(pltpu.get_tpu_info().vmem_capacity_bytes)
    except Exception:
        vmem_cap = 64 * 1024 * 1024          # conservative fallback (v7x size)
    usable = int(vmem_cap * 0.8)             # ~51 MiB on v7x, ~102 MiB on v5e/v6e

    # Resident vs streamed hidden-weight stack.
    stream_hidden = bool(force_stream) and num_layers > 0
    if num_layers > 0 and not stream_hidden:
        if _vmem_bytes(128, Kp, Hp, Np, num_layers, False) > usable:
            stream_hidden = True

    # ---- batch tiling --------------------------------------------------------
    # B <= 16: one 16-row tile. B > 16: at least two grid steps (so the
    # "parallel" axis shards across both v7x TensorCores), targeting 256-row
    # tiles (full-width MXU on v6e/v7x), falling back to 128 if VMEM is tight.
    if B <= _SUBLANE:
        ntiles = 1
        tile_b = _round_up(max(B, 1), _SUBLANE)
    else:
        ntiles = max(2, _cdiv(B, 256))
        tile_b = _round_up(_cdiv(B, ntiles), _SUBLANE)
        if tile_b > 128 and _vmem_bytes(tile_b, Kp, Hp, Np, num_layers,
                                        stream_hidden) > usable:
            ntiles = max(2, _cdiv(B, 128))
            tile_b = _round_up(_cdiv(B, ntiles), _SUBLANE)
    Bp = ntiles * tile_b
    grid = (ntiles,)

    # Zero padding is exact: padded features / hidden units stay zero through
    # every layer, and padded batch rows / output columns are sliced off.
    x_p = _pad_to(x, (Bp, Kp)).astype(jnp.bfloat16)
    w_in_p = _pad_to(w_in, (Kp, Hp)).astype(jnp.bfloat16)
    b_in_p = _pad_to(b_in, (1, Hp)).astype(jnp.float32)
    w_out_p = _pad_to(w_out, (Hp, Np)).astype(jnp.bfloat16)
    b_out_p = _pad_to(b_out, (1, Np)).astype(jnp.float32)

    # Grid-invariant operands: single-buffered (halves their VMEM footprint).
    def _resident_spec(shape):
        nd = len(shape)
        return pl.BlockSpec(shape, lambda i, _nd=nd: (0,) * _nd,
                            pipeline_mode=pl.Buffered(1))

    args = [x_p, w_in_p, b_in_p]
    in_specs = [
        pl.BlockSpec((tile_b, Kp), lambda i: (i, 0)),   # x batch tile (pipelined)
        _resident_spec((Kp, Hp)),                        # W_in
        _resident_spec((1, Hp)),                         # b_in
    ]

    if num_layers > 0:
        w_hid = jnp.stack([w for w, _ in hidden])        # [L, H0, H0]
        b_hid = jnp.stack([b for _, b in hidden])        # [L, 1, H0]
        w_hid_p = _pad_to(w_hid, (num_layers, Hp, Hp)).astype(jnp.bfloat16)
        b_hid_p = _pad_to(b_hid, (num_layers, 1, Hp)).astype(jnp.float32)
        args += [w_hid_p, b_hid_p]
        if stream_hidden:
            # Keep the full stack in HBM; the kernel double-buffers one layer
            # slab at a time with manual DMA.
            in_specs.append(pl.BlockSpec(memory_space=pl.ANY))
        else:
            in_specs.append(_resident_spec((num_layers, Hp, Hp)))
        in_specs.append(_resident_spec((num_layers, 1, Hp)))

    args += [w_out_p, b_out_p]
    in_specs += [_resident_spec((Hp, Np)), _resident_spec((1, Np))]

    scratch_shapes = []
    if num_layers > 0 and stream_hidden:
        scratch_shapes = [
            pltpu.VMEM((2, Hp, Hp), jnp.bfloat16),       # ping-pong layer slabs
            pltpu.SemaphoreType.DMA((2,)),
        ]

    # Advisory cost from true (unpadded) dims.
    flops = 2 * B * (Kin * H0 + num_layers * H0 * H0 + H0 * Nout)
    bytes_accessed = (B * Kin * 2
                      + (Kin * H0 + num_layers * H0 * H0 + H0 * Nout) * 2
                      + ((num_layers + 1) * H0 + Nout) * 4
                      + B * Nout * jnp.dtype(out_dtype).itemsize)

    kernel = functools.partial(_mlp_kernel, num_layers=num_layers,
                               stream_hidden=stream_hidden)
    out_p = pl.pallas_call(
        kernel,
        out_shape=jax.ShapeDtypeStruct((Bp, Np), out_dtype),
        grid=grid,
        in_specs=in_specs,
        out_specs=pl.BlockSpec((tile_b, Np), lambda i: (i, 0)),
        scratch_shapes=scratch_shapes,
        compiler_params=pltpu.CompilerParams(
            dimension_semantics=("parallel",),
            vmem_limit_bytes=usable,
        ),
        cost_estimate=pl.CostEstimate(
            flops=flops, transcendentals=0, bytes_accessed=bytes_accessed),
    )(*args)

    return out_p[:B, :Nout]


# -----------------------------------------------------------------------------
# Parameter construction (mirrors MLP.__init__ shapes; weights stored [in,out])
# -----------------------------------------------------------------------------
def init_mlp_params(key, num_tokens, num_outputs, num_hid, num_layers,
                    max_len, partition_init=150.0):
    in_dim = num_tokens * max_len
    params = {}

    def linear_init(k, fan_in, fan_out):
        kw, kb = jax.random.split(k)
        bound = 1.0 / jnp.sqrt(fan_in)
        w = jax.random.uniform(kw, (fan_in, fan_out), jnp.float32, -bound, bound)
        b = jax.random.uniform(kb, (1, fan_out), jnp.float32, -bound, bound)
        return w, b

    keys = jax.random.split(key, num_layers + 2)
    params["input"] = linear_init(keys[0], in_dim, num_hid)
    params["hidden"] = [
        linear_init(keys[1 + i], num_hid, num_hid) for i in range(num_layers)
    ]
    params["output"] = linear_init(keys[num_layers + 1], num_hid, num_outputs)
    # _Z parameter (unused in forward, kept for parity with the module).
    params["_Z"] = jnp.ones((64,), jnp.float32) * partition_init / 64.0
    return params


# -----------------------------------------------------------------------------
# Pure-JAX references for sanity checking
# -----------------------------------------------------------------------------
def mlp_forward_ref(params, x, mxu_bf16=True):
    """Reference. With mxu_bf16=True it mimics the kernel's bf16 MXU inputs
    with f32 accumulation so the comparison can be tight."""
    def cast(a):
        return a.astype(jnp.bfloat16).astype(jnp.float32) if mxu_bf16 else a

    def dot(a, b):
        return jax.lax.dot(cast(a), cast(b),
                           precision=jax.lax.Precision.HIGHEST)

    w_in, b_in = params["input"]
    h = dot(x, w_in) + b_in
    for w_h, b_h in params["hidden"]:
        h = dot(jnp.maximum(h, 0.0), w_h) + b_h
    w_out, b_out = params["output"]
    return dot(h, w_out) + b_out


if __name__ == "__main__":
    # Small config consistent with the module's __init__.
    num_tokens = 4
    max_len = 8
    num_hid = 32
    num_layers = 2
    num_outputs = 3
    batch = 2

    key = jax.random.PRNGKey(0)
    k_param, k_x, k_x2 = jax.random.split(key, 3)

    params = init_mlp_params(k_param, num_tokens, num_outputs, num_hid,
                             num_layers, max_len)

    # x: [batch, num_tokens * max_len] (flattened one-hot sequence).
    x = jax.random.normal(k_x, (batch, num_tokens * max_len), jnp.float32)
    mask = jnp.ones_like(x)  # unused in the non-return_all path

    # 1) Default (resident-weights) path.
    out = jax.block_until_ready(mlp_forward(params, x, mask))
    assert out.shape == (batch, num_outputs), out.shape
    ref_bf16 = mlp_forward_ref(params, x, mxu_bf16=True)
    assert jnp.allclose(out, ref_bf16, atol=5e-3, rtol=5e-3), (
        f"resident: max abs diff {jnp.max(jnp.abs(out - ref_bf16))}")
    ref_f32 = mlp_forward_ref(params, x, mxu_bf16=False)
    assert jnp.allclose(out, ref_f32, atol=5e-2, rtol=5e-2), (
        f"resident vs f32: max abs diff {jnp.max(jnp.abs(out - ref_f32))}")

    # 2) Streamed hidden-weights path (v7x large-model fallback), forced.
    out_s = jax.block_until_ready(mlp_forward(params, x, mask,
                                              force_stream=True))
    assert jnp.allclose(out_s, ref_bf16, atol=5e-3, rtol=5e-3), (
        f"streamed: max abs diff {jnp.max(jnp.abs(out_s - ref_bf16))}")

    # 3) Multi-tile grid (>= 2 steps so both v7x TensorCores get work).
    xb = jax.random.normal(k_x2, (48, num_tokens * max_len), jnp.float32)
    out_b = jax.block_until_ready(mlp_forward(params, xb, jnp.ones_like(xb)))
    ref_b = mlp_forward_ref(params, xb, mxu_bf16=True)
    assert out_b.shape == (48, num_outputs), out_b.shape
    assert jnp.allclose(out_b, ref_b, atol=5e-3, rtol=5e-3), (
        f"multi-tile: max abs diff {jnp.max(jnp.abs(out_b - ref_b))}")

    # 4) Zero-hidden-layer variant (no dummy weight stack / DMA).
    params0 = init_mlp_params(k_param, num_tokens, num_outputs, num_hid, 0,
                              max_len)
    out0 = jax.block_until_ready(mlp_forward(params0, x, mask))
    ref0 = mlp_forward_ref(params0, x, mxu_bf16=True)
    assert jnp.allclose(out0, ref0, atol=5e-3, rtol=5e-3), (
        f"no-hidden: max abs diff {jnp.max(jnp.abs(out0 - ref0))}")

    print("KERNEL_OK")
</pallas_src>

<mosaic_0001>
module attributes {stable_mosaic.version = 11 : i64} {
  func.func @_mlp_kernel(%arg0: i32, %arg1: memref<16x128xbf16, #tpu.memory_space<vmem>>, %arg2: memref<128x128xbf16, #tpu.memory_space<vmem>>, %arg3: memref<1x128xf32, #tpu.memory_space<vmem>>, %arg4: memref<2x128x128xbf16, #tpu.memory_space<vmem>>, %arg5: memref<2x1x128xf32, #tpu.memory_space<vmem>>, %arg6: memref<128x128xbf16, #tpu.memory_space<vmem>>, %arg7: memref<1x128xf32, #tpu.memory_space<vmem>>, %arg8: memref<16x128xf32, #tpu.memory_space<vmem>>) attributes {dimension_semantics = [#tpu.dimension_semantics<parallel>], iteration_bounds = array<i64: 1>, scalar_prefetch = 0 : i64, scratch_operands = 0 : i64, tpu.core_type = #tpu.core_type<tc>, window_params = [{transform_indices = @transform_0, window_bounds = array<i64: 16, 128>}, {pipeline_mode = #tpu.pipeline_mode<synchronous>, transform_indices = @transform_1, window_bounds = array<i64: 128, 128>}, {pipeline_mode = #tpu.pipeline_mode<synchronous>, transform_indices = @transform_2, window_bounds = array<i64: 1, 128>}, {pipeline_mode = #tpu.pipeline_mode<synchronous>, transform_indices = @transform_3, window_bounds = array<i64: 2, 128, 128>}, {pipeline_mode = #tpu.pipeline_mode<synchronous>, transform_indices = @transform_4, window_bounds = array<i64: 2, 1, 128>}, {pipeline_mode = #tpu.pipeline_mode<synchronous>, transform_indices = @transform_5, window_bounds = array<i64: 128, 128>}, {pipeline_mode = #tpu.pipeline_mode<synchronous>, transform_indices = @transform_6, window_bounds = array<i64: 1, 128>}, {transform_indices = @transform_7, window_bounds = array<i64: 16, 128>}]} {
    %c0 = arith.constant 0 : index
    %c0_0 = arith.constant 0 : index
    %0 = vector.load %arg1[%c0, %c0_0] : memref<16x128xbf16, #tpu.memory_space<vmem>>, vector<16x128xbf16>
    %c0_1 = arith.constant 0 : index
    %c0_2 = arith.constant 0 : index
    %1 = vector.load %arg2[%c0_1, %c0_2] : memref<128x128xbf16, #tpu.memory_space<vmem>>, vector<128x128xbf16>
    %cst = arith.constant dense<0.000000e+00> : vector<16x128xf32>
    %2 = tpu.matmul %0, %1, %cst {dimension_numbers = #tpu.dot_dimension_numbers<[1], [0], [0], [1], [0, 0, 1, 1], [], []>} : vector<16x128xbf16>, vector<128x128xbf16>, vector<16x128xf32> -> vector<16x128xf32>
    %c0_3 = arith.constant 0 : index
    %c0_4 = arith.constant 0 : index
    %3 = vector.load %arg3[%c0_3, %c0_4] : memref<1x128xf32, #tpu.memory_space<vmem>>, vector<1x128xf32>
    %4 = vector.broadcast %3 : vector<1x128xf32> to vector<16x128xf32>
    %5 = arith.addf %2, %4 : vector<16x128xf32>
    %cst_5 = arith.constant 0.000000e+00 : f32
    %6 = vector.broadcast %cst_5 : f32 to vector<16x128xf32>
    %7 = arith.maximumf %5, %6 : vector<16x128xf32>
    %8 = arith.truncf %7 : vector<16x128xf32> to vector<16x128xbf16>
    %c0_6 = arith.constant 0 : index
    %c0_7 = arith.constant 0 : index
    %c0_8 = arith.constant 0 : index
    %9 = vector.load %arg4[%c0_6, %c0_7, %c0_8] : memref<2x128x128xbf16, #tpu.memory_space<vmem>>, vector<1x128x128xbf16>
    %10 = vector.shape_cast %9 : vector<1x128x128xbf16> to vector<128x128xbf16>
    %cst_9 = arith.constant dense<0.000000e+00> : vector<16x128xf32>
    %11 = tpu.matmul %8, %10, %cst_9 {dimension_numbers = #tpu.dot_dimension_numbers<[1], [0], [0], [1], [0, 0, 1, 1], [], []>} : vector<16x128xbf16>, vector<128x128xbf16>, vector<16x128xf32> -> vector<16x128xf32>
    %c0_10 = arith.constant 0 : index
    %c0_11 = arith.constant 0 : index
    %c0_12 = arith.constant 0 : index
    %12 = vector.load %arg5[%c0_10, %c0_11, %c0_12] : memref<2x1x128xf32, #tpu.memory_space<vmem>>, vector<1x1x128xf32>
    %13 = vector.shape_cast %12 : vector<1x1x128xf32> to vector<1x128xf32>
    %14 = vector.broadcast %13 : vector<1x128xf32> to vector<16x128xf32>
    %15 = arith.addf %11, %14 : vector<16x128xf32>
    %cst_13 = arith.constant 0.000000e+00 : f32
    %16 = vector.broadcast %cst_13 : f32 to vector<16x128xf32>
    %17 = arith.maximumf %15, %16 : vector<16x128xf32>
    %18 = arith.truncf %17 : vector<16x128xf32> to vector<16x128xbf16>
    %c1 = arith.constant 1 : index
    %c0_14 = arith.constant 0 : index
    %c0_15 = arith.constant 0 : index
    %19 = vector.load %arg4[%c1, %c0_14, %c0_15] : memref<2x128x128xbf16, #tpu.memory_space<vmem>>, vector<1x128x128xbf16>
    %20 = vector.shape_cast %19 : vector<1x128x128xbf16> to vector<128x128xbf16>
    %cst_16 = arith.constant dense<0.000000e+00> : vector<16x128xf32>
    %21 = tpu.matmul %18, %20, %cst_16 {dimension_numbers = #tpu.dot_dimension_numbers<[1], [0], [0], [1], [0, 0, 1, 1], [], []>} : vector<16x128xbf16>, vector<128x128xbf16>, vector<16x128xf32> -> vector<16x128xf32>
    %c1_17 = arith.constant 1 : index
    %c0_18 = arith.constant 0 : index
    %c0_19 = arith.constant 0 : index
    %22 = vector.load %arg5[%c1_17, %c0_18, %c0_19] : memref<2x1x128xf32, #tpu.memory_space<vmem>>, vector<1x1x128xf32>
    %23 = vector.shape_cast %22 : vector<1x1x128xf32> to vector<1x128xf32>
    %24 = vector.broadcast %23 : vector<1x128xf32> to vector<16x128xf32>
    %25 = arith.addf %21, %24 : vector<16x128xf32>
    %26 = arith.truncf %25 : vector<16x128xf32> to vector<16x128xbf16>
    %c0_20 = arith.constant 0 : index
    %c0_21 = arith.constant 0 : index
    %27 = vector.load %arg6[%c0_20, %c0_21] : memref<128x128xbf16, #tpu.memory_space<vmem>>, vector<128x128xbf16>
    %cst_22 = arith.constant dense<0.000000e+00> : vector<16x128xf32>
    %28 = tpu.matmul %26, %27, %cst_22 {dimension_numbers = #tpu.dot_dimension_numbers<[1], [0], [0], [1], [0, 0, 1, 1], [], []>} : vector<16x128xbf16>, vector<128x128xbf16>, vector<16x128xf32> -> vector<16x128xf32>
    %c0_23 = arith.constant 0 : index
    %c0_24 = arith.constant 0 : index
    %29 = vector.load %arg7[%c0_23, %c0_24] : memref<1x128xf32, #tpu.memory_space<vmem>>, vector<1x128xf32>
    %30 = vector.broadcast %29 : vector<1x128xf32> to vector<16x128xf32>
    %31 = arith.addf %28, %30 : vector<16x128xf32>
    %c0_25 = arith.constant 0 : index
    %c0_26 = arith.constant 0 : index
    %32 = vector.load %arg8[%c0_25, %c0_26] : memref<16x128xf32, #tpu.memory_space<vmem>>, vector<16x128xf32>
    tpu.vector_store %arg8[%c0_25, %c0_26], %31 {strides = array<i32>} : memref<16x128xf32, #tpu.memory_space<vmem>>, vector<16x128xf32>,
    return
  }
  func.func @transform_0(%arg0: i32) -> (i32, i32) {
    %c0_i32 = arith.constant 0 : i32
    %c0_i32_0 = arith.constant 0 : i32
    return %arg0, %c0_i32 : i32, i32
  }
  func.func @transform_1(%arg0: i32) -> (i32, i32) {
    %c0_i32 = arith.constant 0 : i32
    %c0_i32_0 = arith.constant 0 : i32
    %c0_i32_1 = arith.constant 0 : i32
    return %c0_i32, %c0_i32_0 : i32, i32
  }
  func.func @transform_2(%arg0: i32) -> (i32, i32) {
    %c0_i32 = arith.constant 0 : i32
    %c0_i32_0 = arith.constant 0 : i32
    %c0_i32_1 = arith.constant 0 : i32
    return %c0_i32, %c0_i32_0 : i32, i32
  }
  func.func @transform_3(%arg0: i32) -> (i32, i32, i32) {
    %c0_i32 = arith.constant 0 : i32
    %c0_i32_0 = arith.constant 0 : i32
    %c0_i32_1 = arith.constant 0 : i32
    %c0_i32_2 = arith.constant 0 : i32
    return %c0_i32, %c0_i32_0, %c0_i32_1 : i32, i32, i32
  }
  func.func @transform_4(%arg0: i32) -> (i32, i32, i32) {
    %c0_i32 = arith.constant 0 : i32
    %c0_i32_0 = arith.constant 0 : i32
    %c0_i32_1 = arith.constant 0 : i32
    %c0_i32_2 = arith.constant 0 : i32
    return %c0_i32, %c0_i32_0, %c0_i32_1 : i32, i32, i32
  }
  func.func @transform_5(%arg0: i32) -> (i32, i32) {
    %c0_i32 = arith.constant 0 : i32
    %c0_i32_0 = arith.constant 0 : i32
    %c0_i32_1 = arith.constant 0 : i32
    return %c0_i32, %c0_i32_0 : i32, i32
  }
  func.func @transform_6(%arg0: i32) -> (i32, i32) {
    %c0_i32 = arith.constant 0 : i32
    %c0_i32_0 = arith.constant 0 : i32
    %c0_i32_1 = arith.constant 0 : i32
    return %c0_i32, %c0_i32_0 : i32, i32
  }
  func.func @transform_7(%arg0: i32) -> (i32, i32) {
    %c0_i32 = arith.constant 0 : i32
    %c0_i32_0 = arith.constant 0 : i32
    return %arg0, %c0_i32 : i32, i32
  }
}

</mosaic_0001>

<llo_original>
// kernel: tpu_custom_call.1
$region0: #{tpu_custom_call.1}
  #allocation0 [shape = 'u32[]', space=smem, size = 0x4, offset = 0x4, fixed_abs, tag = 'smem constant byte address 0x4 - core index']
  #allocation1 [shape = 'u32[144,128]{1,0:T(1,128)}', space=vmem, size = 0x12000, scoped, tag = 'internal scratch']
  %s0 = inlined_call_operand.hbm [shape: bf16[16,128], index: 0, kind: input, shape index: {}]
  %s1 = inlined_call_operand.hbm [shape: bf16[128,128], index: 1, kind: input, shape index: {}]
  %s2 = inlined_call_operand.vmem [shape: f32[1,128], index: 2, kind: input, shape index: {}]
  %s3 = inlined_call_operand.hbm [shape: bf16[2,128,128], index: 3, kind: input, shape index: {}]
  %s4 = inlined_call_operand.vmem [shape: f32[2,1,128], index: 4, kind: input, shape index: {}]
  %s5 = inlined_call_operand.hbm [shape: bf16[128,128], index: 5, kind: input, shape index: {}]
  %s6 = inlined_call_operand.vmem [shape: f32[1,128], index: 6, kind: input, shape index: {}]
  %s7 = inlined_call_operand.hbm [shape: f32[16,128], index: 7, kind: output, shape index: {}]
  %s8 = sld [smem:[#allocation0]]
  $region54: #{tpu_custom_call.1} parent=0
    _
  %s10 = ssub.s32 1, %s8
  %s11 = scalar_select 0, %s10, %s8
  $region1: #{tpu_custom_call.1} parent=0
    #allocation2 [shape = 'u8[4096]{0}', space=vmem, size = 0x1000, scoped, tag = 'input window, operand 0, single buffered']
    #allocation3 [shape = 's32[1]{0}', space=sflag, size = 0x4, scoped, tag = 'scoped memory for tpu_custom_call.1']
    #allocation4 [shape = 's32[1]{0}', space=sflag, size = 0x4, scoped, tag = 'scoped memory for tpu_custom_call.1']
    #allocation5 [shape = 'u8[32768]{0}', space=vmem, size = 0x8000, scoped, tag = 'input window, operand 1, single buffered']
    #allocation6 [shape = 's32[1]{0}', space=sflag, size = 0x4, scoped, tag = 'scoped memory for tpu_custom_call.1']
    #allocation7 [shape = 'u8[65536]{0}', space=vmem, size = 0x10000, scoped, tag = 'input window, operand 3, single buffered']
    #allocation8 [shape = 'u8[32768]{0}', space=vmem, size = 0x8000, scoped, tag = 'input window, operand 5, single buffered']
    #allocation9 [shape = 's32[1]{0}', space=sflag, size = 0x4, scoped, tag = 'scoped memory for tpu_custom_call.1']
    #allocation10 [shape = 'u8[8192]{0}', space=vmem, size = 0x2000, scoped, tag = 'output window, operand 0, single buffered']
    %12 = vsyncpa [#allocation3], 0
    %13 = vsyncpa [#allocation6], 0
    %14 = vsyncpa [#allocation9], 0
    %15 = vsyncpa [#allocation4], 0
    // Predicated region
    $region2: #{tpu_custom_call.1} parent=1 // pred_check
      _
    $region3: #{tpu_custom_call.1} parent=1 // pred_check_branch
      %17 = sbr.rel (0) target = $region5
    $region4: #{tpu_custom_call.1} parent=1 // pred_region
      %s19 = ssub.s32 128, 128
      %20 = vsyncadd [#allocation3], %s19
      %s21 = sshll.u32 [#allocation2], 4
      %s22 = int_to_ptr.vmem [resolvable:$true] %s21
      %27 = dma.hbm_to_vmem [thread:$0]  %s0, 128, %s22, [#allocation3], 64, 64, 4
    $region5: #{tpu_custom_call.1} parent=1 // pred_fallthru
      _
    // Predicated region
    $region6: #{tpu_custom_call.1} parent=1 // pred_check
      _
    $region7: #{tpu_custom_call.1} parent=1 // pred_check_branch
      %29 = sbr.rel (0) target = $region9
    $region8: #{tpu_custom_call.1} parent=1 // pred_region
      %s31 = ssub.s32 1024, 1024
      %32 = vsyncadd [#allocation6], %s31
      %s33 = sshll.u32 [#allocation5], 4
      %s34 = int_to_ptr.vmem [resolvable:$true] %s33
      %39 = dma.hbm_to_vmem [thread:$0]  %s1, 1024, %s34, [#allocation6], 64, 64, 4
    $region9: #{tpu_custom_call.1} parent=1 // pred_fallthru
      _
    // Predicated region
    $region10: #{tpu_custom_call.1} parent=1 // pred_check
      _
    $region11: #{tpu_custom_call.1} parent=1 // pred_check_branch
      %41 = sbr.rel (0) target = $region13
    $region12: #{tpu_custom_call.1} parent=1 // pred_region
      _
    $region13: #{tpu_custom_call.1} parent=1 // pred_fallthru
      _
    // Predicated region
    $region14: #{tpu_custom_call.1} parent=1 // pred_check
      _
    $region15: #{tpu_custom_call.1} parent=1 // pred_check_branch
      %43 = sbr.rel (0) target = $region17
    $region16: #{tpu_custom_call.1} parent=1 // pred_region
      %s45 = ssub.s32 2048, 2048
      %46 = vsyncadd [#allocation6], %s45
      %s47 = sshll.u32 [#allocation7], 4
      %s48 = int_to_ptr.vmem [resolvable:$true] %s47
      %53 = dma.hbm_to_vmem [thread:$0]  %s3, 2048, %s48, [#allocation6], 64, 64, 4
    $region17: #{tpu_custom_call.1} parent=1 // pred_fallthru
      _
    // Predicated region
    $region18: #{tpu_custom_call.1} parent=1 // pred_check
      _
    $region19: #{tpu_custom_call.1} parent=1 // pred_check_branch
      %55 = sbr.rel (0) target = $region21
    $region20: #{tpu_custom_call.1} parent=1 // pred_region
      _
    $region21: #{tpu_custom_call.1} parent=1 // pred_fallthru
      _
    // Predicated region
    $region22: #{tpu_custom_call.1} parent=1 // pred_check
      _
    $region23: #{tpu_custom_call.1} parent=1 // pred_check_branch
      %57 = sbr.rel (0) target = $region25
    $region24: #{tpu_custom_call.1} parent=1 // pred_region
      %s59 = ssub.s32 1024, 1024
      %60 = vsyncadd [#allocation9], %s59
      %s61 = sshll.u32 [#allocation8], 4
      %s62 = int_to_ptr.vmem [resolvable:$true] %s61
      %67 = dma.hbm_to_vmem [thread:$0]  %s5, 1024, %s62, [#allocation9], 64, 64, 4
    $region25: #{tpu_custom_call.1} parent=1 // pred_fallthru
      _
    // Predicated region
    $region26: #{tpu_custom_call.1} parent=1 // pred_check
      _
    $region27: #{tpu_custom_call.1} parent=1 // pred_check_branch
      %69 = sbr.rel (0) target = $region29
    $region28: #{tpu_custom_call.1} parent=1 // pred_region
      _
    $region29: #{tpu_custom_call.1} parent=1 // pred_fallthru
      _
    // Predicated region
    $region30: #{tpu_custom_call.1} parent=1 // pred_check
      _
    $region31: #{tpu_custom_call.1} parent=1 // pred_check_branch
      %71 = sbr.rel (0) target = $region33
    $region32: #{tpu_custom_call.1} parent=1 // pred_region
      %72 = dma.done [#allocation3], 128
    $region33: #{tpu_custom_call.1} parent=1 // pred_fallthru
      _
    // Predicated region
    $region34: #{tpu_custom_call.1} parent=1 // pred_check
      _
    $region35: #{tpu_custom_call.1} parent=1 // pred_check_branch
      %74 = sbr.rel (0) target = $region37
    $region36: #{tpu_custom_call.1} parent=1 // pred_region
      %75 = dma.done [#allocation6], 1024
    $region37: #{tpu_custom_call.1} parent=1 // pred_fallthru
      _
    // Predicated region
    $region38: #{tpu_custom_call.1} parent=1 // pred_check
      _
    $region39: #{tpu_custom_call.1} parent=1 // pred_check_branch
      %77 = sbr.rel (0) target = $region41
    $region40: #{tpu_custom_call.1} parent=1 // pred_region
      %78 = dma.done [#allocation6], 2048
    $region41: #{tpu_custom_call.1} parent=1 // pred_fallthru
      _
    // Predicated region
    $region42: #{tpu_custom_call.1} parent=1 // pred_check
      _
    $region43: #{tpu_custom_call.1} parent=1 // pred_check_branch
      %80 = sbr.rel (0) target = $region45
    $region44: #{tpu_custom_call.1} parent=1 // pred_region
      %81 = dma.done [#allocation9], 1024
    $region45: #{tpu_custom_call.1} parent=1 // pred_fallthru
      _
    %v83 = vld [vmem:[#allocation2] sm:$0xf]
    %v84 = vld [vmem:[#allocation2 + $0x4] sm:$0xf]
    %v85 = vld [vmem:[#allocation5] sm:$0xf]
    %v86 = vld [vmem:[#allocation5 + $0x4] sm:$0xf]
    %v87 = vld [vmem:[#allocation5 + $0x8] sm:$0xf]
    %v88 = vld [vmem:[#allocation5 + $0xc] sm:$0xf]
    %v89 = vld [vmem:[#allocation5 + $0x10] sm:$0xf]
    %v90 = vld [vmem:[#allocation5 + $0x14] sm:$0xf]
    %v91 = vld [vmem:[#allocation5 + $0x18] sm:$0xf]
    %v92 = vld [vmem:[#allocation5 + $0x1c] sm:$0xf]
    %v93 = vld [vmem:[#allocation5 + $0x20] sm:$0xf]
    %v94 = vld [vmem:[#allocation5 + $0x24] sm:$0xf]
    %v95 = vld [vmem:[#allocation5 + $0x28] sm:$0xf]
    %v96 = vld [vmem:[#allocation5 + $0x2c] sm:$0xf]
    %v97 = vld [vmem:[#allocation5 + $0x30] sm:$0xf]
    %v98 = vld [vmem:[#allocation5 + $0x34] sm:$0xf]
    %v99 = vld [vmem:[#allocation5 + $0x38] sm:$0xf]
    %v100 = vld [vmem:[#allocation5 + $0x3c] sm:$0xf]
    %v101 = vld [vmem:[%s2] sm:$0x1]
    %v103 = vlaneseq
    %v104 = vshrl.u32 %v103, 7
    %v105 = vsub.s32 0, %v104
    %v106 = vrot.slane %v101, %v105
    %v110 = vunpack.c.l.b16 %v83
    %v111 = vunpack.c.l.b16 %v84
    %v112 = vpack.c.b16 %v111, %v110
    %v130 = vunpack.c.l.b16 %v85
    %v131 = vunpack.c.l.b16 %v86
    %v132 = vunpack.c.l.b16 %v87
    %v133 = vunpack.c.l.b16 %v88
    %v134 = vunpack.c.l.b16 %v89
    %v135 = vunpack.c.l.b16 %v90
    %v136 = vunpack.c.l.b16 %v91
    %v137 = vunpack.c.l.b16 %v92
    %v138 = vunpack.c.l.b16 %v93
    %v139 = vunpack.c.l.b16 %v94
    %v140 = vunpack.c.l.b16 %v95
    %v141 = vunpack.c.l.b16 %v96
    %v142 = vunpack.c.l.b16 %v97
    %v143 = vunpack.c.l.b16 %v98
    %v144 = vunpack.c.l.b16 %v99
    %v145 = vunpack.c.l.b16 %v100
    %v146 = vpack.c.b16 %v131, %v130
    %v147 = vpack.c.b16 %v133, %v132
    %v148 = vpack.c.b16 %v135, %v134
    %v149 = vpack.c.b16 %v137, %v136
    %v150 = vpack.c.b16 %v139, %v138
    %v151 = vpack.c.b16 %v141, %v140
    %v152 = vpack.c.b16 %v143, %v142
    %v153 = vpack.c.b16 %v145, %v144
    %162 = vmatprep.subr.bf16.mxu0 0
    %163 = vmatpush1.bf16.msra.mxu0 %v146
    %164 = vmatprep.subr.bf16.mxu0 0
    %165 = vmatpush1.bf16.msra.mxu0 %v147
    %166 = vmatprep.subr.bf16.mxu0 0
    %167 = vmatpush1.bf16.msra.mxu0 %v148
    %168 = vmatprep.subr.bf16.mxu0 0
    %169 = vmatpush1.bf16.msra.mxu0 %v149
    %170 = vmatprep.subr.bf16.mxu0 0
    %171 = vmatpush1.bf16.msra.mxu0 %v150
    %172 = vmatprep.subr.bf16.mxu0 0
    %173 = vmatpush1.bf16.msra.mxu0 %v151
    %174 = vmatprep.subr.bf16.mxu0 0
    %175 = vmatpush1.bf16.msra.mxu0 %v152
    %176 = vmatprep.subr.bf16.mxu0 0
    %177 = vmatpush1.bf16.msra.mxu0 %v153
    %178 = vmatprep.subr.bf16.mxu0 0
    %179 = vmatpush1.bf16.msra.mxu0 0
    %180 = vmatprep.subr.bf16.mxu0 0
    %181 = vmatpush1.bf16.msra.mxu0 0
    %182 = vmatprep.subr.bf16.mxu0 0
    %183 = vmatpush1.bf16.msra.mxu0 0
    %184 = vmatprep.subr.bf16.mxu0 0
    %185 = vmatpush1.bf16.msra.mxu0 0
    %186 = vmatprep.subr.bf16.mxu0 0
    %187 = vmatpush1.bf16.msra.mxu0 0
    %188 = vmatprep.subr.bf16.mxu0 0
    %189 = vmatpush1.bf16.msra.mxu0 0
    %190 = vmatprep.subr.bf16.mxu0 0
    %191 = vmatpush1.bf16.msra.mxu0 0
    %192 = vmatprep.subr.bf16.mxu0 0
    %193 = vmatpush1.bf16.msra.mxu0 0
    %194 = vmatprep.mubr.bf16.mxu0 0
    %195 = vmatmul.mubr.bf16.gmra.mrb[0].mxu0 %v112
    %v196 = vpop.f32.mrb[0].mxu0
    %v197 = vadd.f32 %v106, %v196
    %v198 = vpop.f32.mrb[0].mxu0
    %v199 = vpop.f32.mrb[0].mxu0
    %v200 = vadd.f32 %v106, %v199
    %v201 = vpop.f32.mrb[0].mxu0
    %202 = vdwg.mxu0
    %v203 = vmax.f32 %v197, 0.0
    %v204 = vmax.f32 %v200, 0.0
    %v205 = vpack.c.bf16 %v204, %v203
    %v206 = vld [vmem:[#allocation7] sm:$0xf]
    %v207 = vld [vmem:[#allocation7 + $0x4] sm:$0xf]
    %v208 = vld [vmem:[#allocation7 + $0x8] sm:$0xf]
    %v209 = vld [vmem:[#allocation7 + $0xc] sm:$0xf]
    %v210 = vld [vmem:[#allocation7 + $0x10] sm:$0xf]
    %v211 = vld [vmem:[#allocation7 + $0x14] sm:$0xf]
    %v212 = vld [vmem:[#allocation7 + $0x18] sm:$0xf]
    %v213 = vld [vmem:[#allocation7 + $0x1c] sm:$0xf]
    %v214 = vld [vmem:[#allocation7 + $0x20] sm:$0xf]
    %v215 = vld [vmem:[#allocation7 + $0x24] sm:$0xf]
    %v216 = vld [vmem:[#allocation7 + $0x28] sm:$0xf]
    %v217 = vld [vmem:[#allocation7 + $0x2c] sm:$0xf]
    %v218 = vld [vmem:[#allocation7 + $0x30] sm:$0xf]
    %v219 = vld [vmem:[#allocation7 + $0x34] sm:$0xf]
    %v220 = vld [vmem:[#allocation7 + $0x38] sm:$0xf]
    %v221 = vld [vmem:[#allocation7 + $0x3c] sm:$0xf]
    %v222 = vld [vmem:[%s4] sm:$0x1]
    %v224 = vlaneseq
    %v225 = vshrl.u32 %v224, 7
    %v226 = vsub.s32 0, %v225
    %v227 = vrot.slane %v222, %v226
    %v245 = vunpack.c.l.b16 %v206
    %v246 = vunpack.c.l.b16 %v207
    %v247 = vunpack.c.l.b16 %v208
    %v248 = vunpack.c.l.b16 %v209
    %v249 = vunpack.c.l.b16 %v210
    %v250 = vunpack.c.l.b16 %v211
    %v251 = vunpack.c.l.b16 %v212
    %v252 = vunpack.c.l.b16 %v213
    %v253 = vunpack.c.l.b16 %v214
    %v254 = vunpack.c.l.b16 %v215
    %v255 = vunpack.c.l.b16 %v216
    %v256 = vunpack.c.l.b16 %v217
    %v257 = vunpack.c.l.b16 %v218
    %v258 = vunpack.c.l.b16 %v219
    %v259 = vunpack.c.l.b16 %v220
    %v260 = vunpack.c.l.b16 %v221
    %v261 = vpack.c.b16 %v246, %v245
    %v262 = vpack.c.b16 %v248, %v247
    %v263 = vpack.c.b16 %v250, %v249
    %v264 = vpack.c.b16 %v252, %v251
    %v265 = vpack.c.b16 %v254, %v253
    %v266 = vpack.c.b16 %v256, %v255
    %v267 = vpack.c.b16 %v258, %v257
    %v268 = vpack.c.b16 %v260, %v259
    %277 = vmatprep.subr.bf16.mxu0 0
    %278 = vmatpush1.bf16.msra.mxu0 %v261
    %279 = vmatprep.subr.bf16.mxu0 0
    %280 = vmatpush1.bf16.msra.mxu0 %v262
    %281 = vmatprep.subr.bf16.mxu0 0
    %282 = vmatpush1.bf16.msra.mxu0 %v263
    %283 = vmatprep.subr.bf16.mxu0 0
    %284 = vmatpush1.bf16.msra.mxu0 %v264
    %285 = vmatprep.subr.bf16.mxu0 0
    %286 = vmatpush1.bf16.msra.mxu0 %v265
    %287 = vmatprep.subr.bf16.mxu0 0
    %288 = vmatpush1.bf16.msra.mxu0 %v266
    %289 = vmatprep.subr.bf16.mxu0 0
    %290 = vmatpush1.bf16.msra.mxu0 %v267
    %291 = vmatprep.subr.bf16.mxu0 0
    %292 = vmatpush1.bf16.msra.mxu0 %v268
    %293 = vmatprep.subr.bf16.mxu0 0
    %294 = vmatpush1.bf16.msra.mxu0 0
    %295 = vmatprep.subr.bf16.mxu0 0
    %296 = vmatpush1.bf16.msra.mxu0 0
    %297 = vmatprep.subr.bf16.mxu0 0
    %298 = vmatpush1.bf16.msra.mxu0 0
    %299 = vmatprep.subr.bf16.mxu0 0
    %300 = vmatpush1.bf16.msra.mxu0 0
    %301 = vmatprep.subr.bf16.mxu0 0
    %302 = vmatpush1.bf16.msra.mxu0 0
    %303 = vmatprep.subr.bf16.mxu0 0
    %304 = vmatpush1.bf16.msra.mxu0 0
    %305 = vmatprep.subr.bf16.mxu0 0
    %306 = vmatpush1.bf16.msra.mxu0 0
    %307 = vmatprep.subr.bf16.mxu0 0
    %308 = vmatpush1.bf16.msra.mxu0 0
    %309 = vmatprep.mubr.bf16.mxu0 0
    %310 = vmatmul.mubr.bf16.gmra.mrb[0].mxu0 %v205
    %v311 = vpop.f32.mrb[0].mxu0
    %v312 = vadd.f32 %v227, %v311
    %v313 = vpop.f32.mrb[0].mxu0
    %v314 = vpop.f32.mrb[0].mxu0
    %v315 = vadd.f32 %v227, %v314
    %v316 = vpop.f32.mrb[0].mxu0
    %317 = vdwg.mxu0
    %v318 = vmax.f32 %v312, 0.0
    %v319 = vmax.f32 %v315, 0.0
    %v320 = vpack.c.bf16 %v319, %v318
    %s321 = scalar_lea.vmem [#allocation7], 64
    %v322 = vld [vmem:[%s321] sm:$0xf]
    %v323 = vld [vmem:[%s321 + $0x4] sm:$0xf]
    %v324 = vld [vmem:[%s321 + $0x8] sm:$0xf]
    %v325 = vld [vmem:[%s321 + $0xc] sm:$0xf]
    %v326 = vld [vmem:[%s321 + $0x10] sm:$0xf]
    %v327 = vld [vmem:[%s321 + $0x14] sm:$0xf]
    %v328 = vld [vmem:[%s321 + $0x18] sm:$0xf]
    %v329 = vld [vmem:[%s321 + $0x1c] sm:$0xf]
    %v330 = vld [vmem:[%s321 + $0x20] sm:$0xf]
    %v331 = vld [vmem:[%s321 + $0x24] sm:$0xf]
    %v332 = vld [vmem:[%s321 + $0x28] sm:$0xf]
    %v333 = vld [vmem:[%s321 + $0x2c] sm:$0xf]
    %v334 = vld [vmem:[%s321 + $0x30] sm:$0xf]
    %v335 = vld [vmem:[%s321 + $0x34] sm:$0xf]
    %v336 = vld [vmem:[%s321 + $0x38] sm:$0xf]
    %v337 = vld [vmem:[%s321 + $0x3c] sm:$0xf]
    %s338 = scalar_lea.vmem %s4, 1
    %v339 = vld [vmem:[%s338] sm:$0x1]
    %v341 = vlaneseq
    %v342 = vshrl.u32 %v341, 7
    %v343 = vsub.s32 0, %v342
    %v344 = vrot.slane %v339, %v343
    %v362 = vunpack.c.l.b16 %v322
    %v363 = vunpack.c.l.b16 %v323
    %v364 = vunpack.c.l.b16 %v324
    %v365 = vunpack.c.l.b16 %v325
    %v366 = vunpack.c.l.b16 %v326
    %v367 = vunpack.c.l.b16 %v327
    %v368 = vunpack.c.l.b16 %v328
    %v369 = vunpack.c.l.b16 %v329
    %v370 = vunpack.c.l.b16 %v330
    %v371 = vunpack.c.l.b16 %v331
    %v372 = vunpack.c.l.b16 %v332
    %v373 = vunpack.c.l.b16 %v333
    %v374 = vunpack.c.l.b16 %v334
    %v375 = vunpack.c.l.b16 %v335
    %v376 = vunpack.c.l.b16 %v336
    %v377 = vunpack.c.l.b16 %v337
    %v378 = vpack.c.b16 %v363, %v362
    %v379 = vpack.c.b16 %v365, %v364
    %v380 = vpack.c.b16 %v367, %v366
    %v381 = vpack.c.b16 %v369, %v368
    %v382 = vpack.c.b16 %v371, %v370
    %v383 = vpack.c.b16 %v373, %v372
    %v384 = vpack.c.b16 %v375, %v374
    %v385 = vpack.c.b16 %v377, %v376
    %394 = vmatprep.subr.bf16.mxu0 0
    %395 = vmatpush1.bf16.msra.mxu0 %v378
    %396 = vmatprep.subr.bf16.mxu0 0
    %397 = vmatpush1.bf16.msra.mxu0 %v379
    %398 = vmatprep.subr.bf16.mxu0 0
    %399 = vmatpush1.bf16.msra.mxu0 %v380
    %400 = vmatprep.subr.bf16.mxu0 0
    %401 = vmatpush1.bf16.msra.mxu0 %v381
    %402 = vmatprep.subr.bf16.mxu0 0
    %403 = vmatpush1.bf16.msra.mxu0 %v382
    %404 = vmatprep.subr.bf16.mxu0 0
    %405 = vmatpush1.bf16.msra.mxu0 %v383
    %406 = vmatprep.subr.bf16.mxu0 0
    %407 = vmatpush1.bf16.msra.mxu0 %v384
    %408 = vmatprep.subr.bf16.mxu0 0
    %409 = vmatpush1.bf16.msra.mxu0 %v385
    %410 = vmatprep.subr.bf16.mxu0 0
    %411 = vmatpush1.bf16.msra.mxu0 0
    %412 = vmatprep.subr.bf16.mxu0 0
    %413 = vmatpush1.bf16.msra.mxu0 0
    %414 = vmatprep.subr.bf16.mxu0 0
    %415 = vmatpush1.bf16.msra.mxu0 0
    %416 = vmatprep.subr.bf16.mxu0 0
    %417 = vmatpush1.bf16.msra.mxu0 0
    %418 = vmatprep.subr.bf16.mxu0 0
    %419 = vmatpush1.bf16.msra.mxu0 0
    %420 = vmatprep.subr.bf16.mxu0 0
    %421 = vmatpush1.bf16.msra.mxu0 0
    %422 = vmatprep.subr.bf16.mxu0 0
    %423 = vmatpush1.bf16.msra.mxu0 0
    %424 = vmatprep.subr.bf16.mxu0 0
    %425 = vmatpush1.bf16.msra.mxu0 0
    %426 = vmatprep.mubr.bf16.mxu0 0
    %427 = vmatmul.mubr.bf16.gmra.mrb[0].mxu0 %v320
    %v428 = vpop.f32.mrb[0].mxu0
    %v429 = vadd.f32 %v344, %v428
    %v430 = vpop.f32.mrb[0].mxu0
    %v431 = vpop.f32.mrb[0].mxu0
    %v432 = vadd.f32 %v344, %v431
    %v433 = vpop.f32.mrb[0].mxu0
    %434 = vdwg.mxu0
    %v435 = vpack.c.bf16 %v432, %v429
    %v436 = vld [vmem:[#allocation8] sm:$0xf]
    %v437 = vld [vmem:[#allocation8 + $0x4] sm:$0xf]
    %v438 = vld [vmem:[#allocation8 + $0x8] sm:$0xf]
    %v439 = vld [vmem:[#allocation8 + $0xc] sm:$0xf]
    %v440 = vld [vmem:[#allocation8 + $0x10] sm:$0xf]
    %v441 = vld [vmem:[#allocation8 + $0x14] sm:$0xf]
    %v442 = vld [vmem:[#allocation8 + $0x18] sm:$0xf]
    %v443 = vld [vmem:[#allocation8 + $0x1c] sm:$0xf]
    %v444 = vld [vmem:[#allocation8 + $0x20] sm:$0xf]
    %v445 = vld [vmem:[#allocation8 + $0x24] sm:$0xf]
    %v446 = vld [vmem:[#allocation8 + $0x28] sm:$0xf]
    %v447 = vld [vmem:[#allocation8 + $0x2c] sm:$0xf]
    %v448 = vld [vmem:[#allocation8 + $0x30] sm:$0xf]
    %v449 = vld [vmem:[#allocation8 + $0x34] sm:$0xf]
    %v450 = vld [vmem:[#allocation8 + $0x38] sm:$0xf]
    %v451 = vld [vmem:[#allocation8 + $0x3c] sm:$0xf]
    %v452 = vld [vmem:[%s6] sm:$0x1]
    %v454 = vlaneseq
    %v455 = vshrl.u32 %v454, 7
    %v456 = vsub.s32 0, %v455
    %v457 = vrot.slane %v452, %v456
    %v475 = vunpack.c.l.b16 %v436
    %v476 = vunpack.c.l.b16 %v437
    %v477 = vunpack.c.l.b16 %v438
    %v478 = vunpack.c.l.b16 %v439
    %v479 = vunpack.c.l.b16 %v440
    %v480 = vunpack.c.l.b16 %v441
    %v481 = vunpack.c.l.b16 %v442
    %v482 = vunpack.c.l.b16 %v443
    %v483 = vunpack.c.l.b16 %v444
    %v484 = vunpack.c.l.b16 %v445
    %v485 = vunpack.c.l.b16 %v446
    %v486 = vunpack.c.l.b16 %v447
    %v487 = vunpack.c.l.b16 %v448
    %v488 = vunpack.c.l.b16 %v449
    %v489 = vunpack.c.l.b16 %v450
    %v490 = vunpack.c.l.b16 %v451
    %v491 = vpack.c.b16 %v476, %v475
    %v492 = vpack.c.b16 %v478, %v477
    %v493 = vpack.c.b16 %v480, %v479
    %v494 = vpack.c.b16 %v482, %v481
    %v495 = vpack.c.b16 %v484, %v483
    %v496 = vpack.c.b16 %v486, %v485
    %v497 = vpack.c.b16 %v488, %v487
    %v498 = vpack.c.b16 %v490, %v489
    %507 = vmatprep.subr.bf16.mxu0 0
    %508 = vmatpush1.bf16.msra.mxu0 %v491
    %509 = vmatprep.subr.bf16.mxu0 0
    %510 = vmatpush1.bf16.msra.mxu0 %v492
    %511 = vmatprep.subr.bf16.mxu0 0
    %512 = vmatpush1.bf16.msra.mxu0 %v493
    %513 = vmatprep.subr.bf16.mxu0 0
    %514 = vmatpush1.bf16.msra.mxu0 %v494
    %515 = vmatprep.subr.bf16.mxu0 0
    %516 = vmatpush1.bf16.msra.mxu0 %v495
    %517 = vmatprep.subr.bf16.mxu0 0
    %518 = vmatpush1.bf16.msra.mxu0 %v496
    %519 = vmatprep.subr.bf16.mxu0 0
    %520 = vmatpush1.bf16.msra.mxu0 %v497
    %521 = vmatprep.subr.bf16.mxu0 0
    %522 = vmatpush1.bf16.msra.mxu0 %v498
    %523 = vmatprep.subr.bf16.mxu0 0
    %524 = vmatpush1.bf16.msra.mxu0 0
    %525 = vmatprep.subr.bf16.mxu0 0
    %526 = vmatpush1.bf16.msra.mxu0 0
    %527 = vmatprep.subr.bf16.mxu0 0
    %528 = vmatpush1.bf16.msra.mxu0 0
    %529 = vmatprep.subr.bf16.mxu0 0
    %530 = vmatpush1.bf16.msra.mxu0 0
    %531 = vmatprep.subr.bf16.mxu0 0
    %532 = vmatpush1.bf16.msra.mxu0 0
    %533 = vmatprep.subr.bf16.mxu0 0
    %534 = vmatpush1.bf16.msra.mxu0 0
    %535 = vmatprep.subr.bf16.mxu0 0
    %536 = vmatpush1.bf16.msra.mxu0 0
    %537 = vmatprep.subr.bf16.mxu0 0
    %538 = vmatpush1.bf16.msra.mxu0 0
    %539 = vmatprep.mubr.bf16.mxu0 0
    %540 = vmatmul.mubr.bf16.gmra.mrb[0].mxu0 %v435
    %v541 = vpop.f32.mrb[0].mxu0
    %v542 = vadd.f32 %v457, %v541
    %v543 = vpop.f32.mrb[0].mxu0
    %v544 = vpop.f32.mrb[0].mxu0
    %v545 = vadd.f32 %v457, %v544
    %v546 = vpop.f32.mrb[0].mxu0
    %547 = vdwg.mxu0
    %548 = vst [vmem:[#allocation10] sm:$0xff] %v542
    %549 = vst [vmem:[#allocation10 + $0x8] sm:$0xff] %v545
    // Predicated region
    $region46: #{tpu_custom_call.1} parent=1 // pred_check
      _
    $region47: #{tpu_custom_call.1} parent=1 // pred_check_branch
      %551 = sbr.rel (0) target = $region49
    $region48: #{tpu_custom_call.1} parent=1 // pred_region
      %s553 = ssub.s32 256, 256
      %554 = vsyncadd [#allocation4], %s553
      %s555 = sshll.u32 [#allocation10], 4
      %s556 = int_to_ptr.vmem [resolvable:$true] %s555
      %561 = dma.vmem_to_hbm [thread:$0]  %s556, 256, %s7, [#allocation4], 128, 128, 8
    $region49: #{tpu_custom_call.1} parent=1 // pred_fallthru
      _
    // Predicated region
    $region50: #{tpu_custom_call.1} parent=1 // pred_check
      _
    $region51: #{tpu_custom_call.1} parent=1 // pred_check_branch
      %563 = sbr.rel (0) target = $region53
    $region52: #{tpu_custom_call.1} parent=1 // pred_region
      %564 = dma.done [#allocation4], 256
    $region53: #{tpu_custom_call.1} parent=1 // pred_fallthru
      _
    %565 = vsyncpa [#allocation3], 1
    %566 = vsyncpa [#allocation6], 1
    %567 = vsyncpa [#allocation9], 1
    %568 = vsyncpa [#allocation4], 1

</llo_original>
